<compile_context>
chip_gen: v7x
topology: tpu7x:2x2x1
jax: 0.10.0
libtpu: 0.0.40
codegen_flags: <defaults>
</compile_context>

<pallas_src>
import functools

import jax
import jax.numpy as jnp
from jax.experimental import pallas as pl
from jax.experimental.pallas import tpu as pltpu


def _se_kernel(x_ref, w1_ref, b1_ref, w2_ref, b2_ref, o_ref, *, inv_hw):
    # --- squeeze: global average pool over the spatial (lane) axis ---------
    # Read x_ref for the reduction only; the tile is NOT kept live across the
    # excitation (it is re-read for the final scale below).
    y = jnp.sum(x_ref[...], axis=-1, dtype=jnp.float32) * inv_hw        # (TB, C)

    # --- excitation: FC -> ReLU -> FC -> Sigmoid (tiny; filler under DMA) --
    h = jnp.dot(y, w1_ref[...], preferred_element_type=jnp.float32) + b1_ref[...]
    h = jnp.maximum(h, 0.0)                                             # (TB, Cr)
    s = jnp.dot(h, w2_ref[...], preferred_element_type=jnp.float32) + b2_ref[...]
    s = jax.nn.sigmoid(s)                                               # (TB, C)

    # --- scale: per-channel gate, f32 math, cast at the store ---------------
    gate = s[..., None]                                                 # (TB, C, 1)
    o_ref[...] = (x_ref[...].astype(jnp.float32) * gate).astype(o_ref.dtype)


def _tpu_hw_params():
    """Best-effort per-TensorCore VMEM size and multi-TC (v7x) detection."""
    vmem_bytes = 128 * 1024 * 1024
    multi_tc = False
    try:
        info = pltpu.get_tpu_info()
        vmem_bytes = int(getattr(info, "vmem_capacity_bytes", vmem_bytes))
    except Exception:
        pass
    try:
        kind = jax.devices()[0].device_kind.lower()
        if "7" in kind:
            multi_tc = True
    except Exception:
        pass
    if vmem_bytes <= 96 * 1024 * 1024:
        multi_tc = True  # 64 MiB/TC VMEM => v7x-class chip with 2 TensorCores
    return vmem_bytes, multi_tc


def se_layer(x, w1, b1, w2, b2, *, block_bytes_budget=None, vmem_limit_bytes=None):
    """x: (B, C, H, W) NCHW.  w1: (C, C//r), b1: (C//r,), w2: (C//r, C), b2: (C,).

    Weights are stored pre-transposed to (in, out) so the kernel does y @ W + b.
    """
    B, C, H, W = x.shape
    HW = H * W
    Cr = w1.shape[1]
    itemsize = jnp.dtype(x.dtype).itemsize

    vmem_bytes, multi_tc = _tpu_hw_params()
    if block_bytes_budget is None:
        # v7x (64 MiB VMEM/TC): ~10 MiB blocks; v5e/v6e (128 MiB): 16 MiB blocks.
        block_bytes_budget = (10 if multi_tc else 16) * 1024 * 1024
    if vmem_limit_bytes is None:
        # 2x in + 2x out double-buffers + weights + compiler scratch headroom.
        vmem_limit_bytes = (56 if multi_tc else 100) * 1024 * 1024
    vmem_limit_bytes = min(vmem_limit_bytes, int(vmem_bytes * 0.9))

    # Batch elements per block, from the per-buffer VMEM budget.
    per_elem_bytes = C * HW * itemsize
    tb = max(1, block_bytes_budget // per_elem_bytes)
    if multi_tc and B >= 2:
        # Keep >=2 "parallel" grid steps only where there are 2 TensorCores.
        tb = min(tb, (B + 1) // 2)
    tb = min(tb, B)

    steps = pl.cdiv(B, tb)
    if multi_tc and B >= 2 and steps > 1 and steps % 2 == 1:
        # Best effort: even step count so the last step doesn't idle one core.
        tb_try = pl.cdiv(B, steps + 1)
        if pl.cdiv(B, tb_try) % 2 == 0:
            tb = tb_try
            steps = pl.cdiv(B, tb)
    grid = (steps,)

    # No physical padding / unpadding copies: the (C, HW) extents are covered
    # by a single full block, and a ragged trailing batch block is handled by
    # Pallas (OOB reads are row-local garbage, OOB writes are dropped).
    x_flat = x.reshape(B, C, HW)
    b1_2d = b1.reshape(1, Cr)
    b2_2d = b2.reshape(1, C)

    cost = pl.CostEstimate(
        flops=int(2 * B * C * HW + 4 * B * C * Cr),
        transcendentals=int(B * C),
        bytes_accessed=int(2 * B * C * HW * itemsize),
    )

    kernel = functools.partial(_se_kernel, inv_hw=1.0 / HW)

    out_flat = pl.pallas_call(
        kernel,
        out_shape=jax.ShapeDtypeStruct((B, C, HW), x.dtype),
        grid_spec=pltpu.PrefetchScalarGridSpec(
            num_scalar_prefetch=0,
            grid=grid,
            in_specs=[
                pl.BlockSpec((tb, C, HW), lambda b: (b, 0, 0)),   # x block
                pl.BlockSpec((C, Cr), lambda b: (0, 0)),          # w1 (full)
                pl.BlockSpec((1, Cr), lambda b: (0, 0)),          # b1 (full)
                pl.BlockSpec((Cr, C), lambda b: (0, 0)),          # w2 (full)
                pl.BlockSpec((1, C), lambda b: (0, 0)),           # b2 (full)
            ],
            out_specs=pl.BlockSpec((tb, C, HW), lambda b: (b, 0, 0)),
        ),
        compiler_params=pltpu.CompilerParams(
            dimension_semantics=("parallel",),
            vmem_limit_bytes=vmem_limit_bytes,
        ),
        cost_estimate=cost,
    )(x_flat, w1, b1_2d, w2, b2_2d)

    return out_flat.reshape(B, C, H, W)


def se_layer_ref(x, w1, b1, w2, b2):
    """Plain-JAX reference matching the PyTorch forward."""
    y = jnp.mean(x.astype(jnp.float32), axis=(2, 3))             # (B, C)
    h = jnp.maximum(y @ w1 + b1, 0.0)                            # (B, C//r)
    s = jax.nn.sigmoid(h @ w2 + b2)                              # (B, C)
    return (x.astype(jnp.float32) * s[:, :, None, None]).astype(x.dtype)


if __name__ == "__main__":
    B, C, H, W = 2, 32, 16, 16
    reduction = 16
    Cr = C // reduction  # 2

    key = jax.random.PRNGKey(0)
    kx, k1, k2, k3, k4 = jax.random.split(key, 5)

    x = jax.random.normal(kx, (B, C, H, W), dtype=jnp.float32)
    # PyTorch Linear stores (out, in); weights are kept pre-transposed to
    # (in, out) so the kernel computes y @ W + b.
    w1 = jax.random.normal(k1, (C, Cr), dtype=jnp.float32) * 0.1
    b1 = jax.random.normal(k2, (Cr,), dtype=jnp.float32) * 0.1
    w2 = jax.random.normal(k3, (Cr, C), dtype=jnp.float32) * 0.1
    b2 = jax.random.normal(k4, (C,), dtype=jnp.float32) * 0.1

    out = se_layer(x, w1, b1, w2, b2)
    jax.block_until_ready(out)

    ref = se_layer_ref(x, w1, b1, w2, b2)
    assert out.shape == (B, C, H, W)
    assert jnp.allclose(out, ref, atol=1e-5, rtol=1e-5), "mismatch vs reference"

    print("KERNEL_OK")
</pallas_src>

<mosaic_0001>
module attributes {stable_mosaic.version = 11 : i64} {
  func.func @_se_kernel(%arg0: i32, %arg1: memref<2x32x256xf32, #tpu.memory_space<vmem>>, %arg2: memref<32x2xf32, #tpu.memory_space<vmem>>, %arg3: memref<1x2xf32, #tpu.memory_space<vmem>>, %arg4: memref<2x32xf32, #tpu.memory_space<vmem>>, %arg5: memref<1x32xf32, #tpu.memory_space<vmem>>, %arg6: memref<2x32x256xf32, #tpu.memory_space<vmem>>) attributes {dimension_semantics = [#tpu.dimension_semantics<parallel>], iteration_bounds = array<i64: 1>, scalar_prefetch = 0 : i64, scratch_operands = 0 : i64, tpu.core_type = #tpu.core_type<tc>, window_params = [{transform_indices = @transform_0, window_bounds = array<i64: 2, 32, 256>}, {pipeline_mode = #tpu.pipeline_mode<synchronous>, transform_indices = @transform_1, window_bounds = array<i64: 32, 2>}, {pipeline_mode = #tpu.pipeline_mode<synchronous>, transform_indices = @transform_2, window_bounds = array<i64: 1, 2>}, {pipeline_mode = #tpu.pipeline_mode<synchronous>, transform_indices = @transform_3, window_bounds = array<i64: 2, 32>}, {pipeline_mode = #tpu.pipeline_mode<synchronous>, transform_indices = @transform_4, window_bounds = array<i64: 1, 32>}, {transform_indices = @transform_5, window_bounds = array<i64: 2, 32, 256>}]} {
    %c0 = arith.constant 0 : index
    %c0_0 = arith.constant 0 : index
    %c0_1 = arith.constant 0 : index
    %0 = vector.load %arg1[%c0, %c0_0, %c0_1] : memref<2x32x256xf32, #tpu.memory_space<vmem>>, vector<2x32x256xf32>
    %cst = arith.constant dense<0.000000e+00> : vector<2x32xf32>
    %1 = vector.multi_reduction <add>, %0, %cst [2] : vector<2x32x256xf32> to vector<2x32xf32>
    %cst_2 = arith.constant 3.906250e-03 : f32
    %2 = vector.broadcast %cst_2 : f32 to vector<2x32xf32>
    %3 = arith.mulf %1, %2 : vector<2x32xf32>
    %c0_3 = arith.constant 0 : index
    %c0_4 = arith.constant 0 : index
    %4 = vector.load %arg2[%c0_3, %c0_4] : memref<32x2xf32, #tpu.memory_space<vmem>>, vector<32x2xf32>
    %cst_5 = arith.constant dense<0.000000e+00> : vector<2x2xf32>
    %5 = tpu.matmul %3, %4, %cst_5 {dimension_numbers = #tpu.dot_dimension_numbers<[1], [0], [0], [1], [0, 0, 1, 1], [], []>} : vector<2x32xf32>, vector<32x2xf32>, vector<2x2xf32> -> vector<2x2xf32>
    %c0_6 = arith.constant 0 : index
    %c0_7 = arith.constant 0 : index
    %6 = vector.load %arg3[%c0_6, %c0_7] : memref<1x2xf32, #tpu.memory_space<vmem>>, vector<1x2xf32>
    %7 = vector.broadcast %6 : vector<1x2xf32> to vector<2x2xf32>
    %8 = arith.addf %5, %7 : vector<2x2xf32>
    %cst_8 = arith.constant 0.000000e+00 : f32
    %9 = vector.broadcast %cst_8 : f32 to vector<2x2xf32>
    %10 = arith.maximumf %8, %9 : vector<2x2xf32>
    %c0_9 = arith.constant 0 : index
    %c0_10 = arith.constant 0 : index
    %11 = vector.load %arg4[%c0_9, %c0_10] : memref<2x32xf32, #tpu.memory_space<vmem>>, vector<2x32xf32>
    %cst_11 = arith.constant dense<0.000000e+00> : vector<2x32xf32>
    %12 = tpu.matmul %10, %11, %cst_11 {dimension_numbers = #tpu.dot_dimension_numbers<[1], [0], [0], [1], [0, 0, 1, 1], [], []>} : vector<2x2xf32>, vector<2x32xf32>, vector<2x32xf32> -> vector<2x32xf32>
    %c0_12 = arith.constant 0 : index
    %c0_13 = arith.constant 0 : index
    %13 = vector.load %arg5[%c0_12, %c0_13] : memref<1x32xf32, #tpu.memory_space<vmem>>, vector<1x32xf32>
    %14 = vector.broadcast %13 : vector<1x32xf32> to vector<2x32xf32>
    %15 = arith.addf %12, %14 : vector<2x32xf32>
    %16 = arith.negf %15 : vector<2x32xf32>
    %17 = math.exp %16 : vector<2x32xf32>
    %cst_14 = arith.constant 1.000000e+00 : f32
    %18 = vector.broadcast %cst_14 : f32 to vector<2x32xf32>
    %19 = arith.addf %18, %17 : vector<2x32xf32>
    %20 = arith.divf %18, %19 : vector<2x32xf32>
    %21 = vector.shape_cast %20 : vector<2x32xf32> to vector<2x32x1xf32>
    %c0_15 = arith.constant 0 : index
    %c0_16 = arith.constant 0 : index
    %c0_17 = arith.constant 0 : index
    %22 = vector.load %arg1[%c0_15, %c0_16, %c0_17] : memref<2x32x256xf32, #tpu.memory_space<vmem>>, vector<2x32x256xf32>
    %23 = vector.broadcast %21 : vector<2x32x1xf32> to vector<2x32x256xf32>
    %24 = arith.mulf %22, %23 : vector<2x32x256xf32>
    %c0_18 = arith.constant 0 : index
    %c0_19 = arith.constant 0 : index
    %c0_20 = arith.constant 0 : index
    %25 = vector.load %arg6[%c0_18, %c0_19, %c0_20] : memref<2x32x256xf32, #tpu.memory_space<vmem>>, vector<2x32x256xf32>
    tpu.vector_store %arg6[%c0_18, %c0_19, %c0_20], %24 {strides = array<i32>} : memref<2x32x256xf32, #tpu.memory_space<vmem>>, vector<2x32x256xf32>,
    return
  }
  func.func @transform_0(%arg0: i32) -> (i32, i32, i32) {
    %c0_i32 = arith.constant 0 : i32
    %c0_i32_0 = arith.constant 0 : i32
    %c0_i32_1 = arith.constant 0 : i32
    return %arg0, %c0_i32, %c0_i32_0 : i32, i32, i32
  }
  func.func @transform_1(%arg0: i32) -> (i32, i32) {
    %c0_i32 = arith.constant 0 : i32
    %c0_i32_0 = arith.constant 0 : i32
    %c0_i32_1 = arith.constant 0 : i32
    return %c0_i32, %c0_i32_0 : i32, i32
  }
  func.func @transform_2(%arg0: i32) -> (i32, i32) {
    %c0_i32 = arith.constant 0 : i32
    %c0_i32_0 = arith.constant 0 : i32
    %c0_i32_1 = arith.constant 0 : i32
    return %c0_i32, %c0_i32_0 : i32, i32
  }
  func.func @transform_3(%arg0: i32) -> (i32, i32) {
    %c0_i32 = arith.constant 0 : i32
    %c0_i32_0 = arith.constant 0 : i32
    %c0_i32_1 = arith.constant 0 : i32
    return %c0_i32, %c0_i32_0 : i32, i32
  }
  func.func @transform_4(%arg0: i32) -> (i32, i32) {
    %c0_i32 = arith.constant 0 : i32
    %c0_i32_0 = arith.constant 0 : i32
    %c0_i32_1 = arith.constant 0 : i32
    return %c0_i32, %c0_i32_0 : i32, i32
  }
  func.func @transform_5(%arg0: i32) -> (i32, i32, i32) {
    %c0_i32 = arith.constant 0 : i32
    %c0_i32_0 = arith.constant 0 : i32
    %c0_i32_1 = arith.constant 0 : i32
    return %arg0, %c0_i32, %c0_i32_0 : i32, i32, i32
  }
}

</mosaic_0001>

<llo_original>
// kernel: tpu_custom_call.1
$region0: #{tpu_custom_call.1}
  #allocation0 [shape = 'u32[]', space=smem, size = 0x4, offset = 0x4, fixed_abs, tag = 'smem constant byte address 0x4 - core index']
  #allocation1 [shape = 'u32[144,128]{1,0:T(1,128)}', space=vmem, size = 0x12000, scoped, tag = 'internal scratch']
  %s0 = inlined_call_operand.hbm [shape: f32[2,32,256], index: 0, kind: input, shape index: {}]
  %s1 = inlined_call_operand.hbm [shape: f32[32,2], index: 1, kind: input, shape index: {}]
  %s2 = inlined_call_operand.hbm [shape: f32[1,2], index: 2, kind: input, shape index: {}]
  %s3 = inlined_call_operand.hbm [shape: f32[2,32], index: 3, kind: input, shape index: {}]
  %s4 = inlined_call_operand.hbm [shape: f32[1,32], index: 4, kind: input, shape index: {}]
  %s5 = inlined_call_operand.hbm [shape: f32[2,32,256], index: 5, kind: output, shape index: {}]
  %s6 = sld [smem:[#allocation0]]
  $region50: #{tpu_custom_call.1} parent=0
    _
  %s8 = ssub.s32 1, %s6
  %s9 = scalar_select 0, %s8, %s6
  $region1: #{tpu_custom_call.1} parent=0
    #allocation2 [shape = 'u8[65536]{0}', space=vmem, size = 0x10000, scoped, tag = 'input window, operand 0, single buffered']
    #allocation3 [shape = 's32[1]{0}', space=sflag, size = 0x4, scoped, tag = 'scoped memory for tpu_custom_call.1']
    #allocation4 [shape = 's32[1]{0}', space=sflag, size = 0x4, scoped, tag = 'scoped memory for tpu_custom_call.1']
    #allocation5 [shape = 'u8[16384]{0}', space=vmem, size = 0x4000, scoped, tag = 'input window, operand 1, single buffered']
    #allocation6 [shape = 's32[1]{0}', space=sflag, size = 0x4, scoped, tag = 'scoped memory for tpu_custom_call.1']
    #allocation7 [shape = 'u8[512]{0}', space=vmem, size = 0x400, scoped, tag = 'input window, operand 2, single buffered']
    #allocation8 [shape = 'u8[1024]{0}', space=vmem, size = 0x400, scoped, tag = 'input window, operand 3, single buffered']
    #allocation9 [shape = 's32[1]{0}', space=sflag, size = 0x4, scoped, tag = 'scoped memory for tpu_custom_call.1']
    #allocation10 [shape = 'u8[512]{0}', space=vmem, size = 0x400, scoped, tag = 'input window, operand 4, single buffered']
    #allocation11 [shape = 'u8[65536]{0}', space=vmem, size = 0x10000, scoped, tag = 'output window, operand 0, single buffered']
    %10 = vsyncpa [#allocation3], 0
    %11 = vsyncpa [#allocation6], 0
    %12 = vsyncpa [#allocation9], 0
    %13 = vsyncpa [#allocation4], 0
    // Predicated region
    $region2: #{tpu_custom_call.1} parent=1 // pred_check
      _
    $region3: #{tpu_custom_call.1} parent=1 // pred_check_branch
      %15 = sbr.rel (0) target = $region5
    $region4: #{tpu_custom_call.1} parent=1 // pred_region
      %s17 = ssub.s32 2048, 2048
      %18 = vsyncadd [#allocation3], %s17
      %s19 = sshll.u32 [#allocation2], 4
      %s20 = int_to_ptr.vmem [resolvable:$true] %s19
      %25 = dma.hbm_to_vmem [thread:$0]  %s0, 2048, %s20, [#allocation3], 256, 256, 16
    $region5: #{tpu_custom_call.1} parent=1 // pred_fallthru
      _
    // Predicated region
    $region6: #{tpu_custom_call.1} parent=1 // pred_check
      _
    $region7: #{tpu_custom_call.1} parent=1 // pred_check_branch
      %27 = sbr.rel (0) target = $region9
    $region8: #{tpu_custom_call.1} parent=1 // pred_region
      %s29 = ssub.s32 512, 512
      %30 = vsyncadd [#allocation6], %s29
      %s31 = sshll.u32 [#allocation5], 4
      %s32 = int_to_ptr.vmem [resolvable:$true] %s31
      %37 = dma.hbm_to_vmem [thread:$0]  %s1, 512, %s32, [#allocation6], 128, 128, 8
    $region9: #{tpu_custom_call.1} parent=1 // pred_fallthru
      _
    // Predicated region
    $region10: #{tpu_custom_call.1} parent=1 // pred_check
      _
    $region11: #{tpu_custom_call.1} parent=1 // pred_check_branch
      %39 = sbr.rel (0) target = $region13
    $region12: #{tpu_custom_call.1} parent=1 // pred_region
      %s41 = ssub.s32 16, 16
      %42 = vsyncadd [#allocation6], %s41
      %s44 = sshll.u32 [#allocation7], 4
      %s45 = int_to_ptr.vmem [resolvable:$true] %s44
      %47 = dma.hbm_to_vmem [thread:$0]  %s2, 16, %s45, [#allocation6]
    $region13: #{tpu_custom_call.1} parent=1 // pred_fallthru
      _
    // Predicated region
    $region14: #{tpu_custom_call.1} parent=1 // pred_check
      _
    $region15: #{tpu_custom_call.1} parent=1 // pred_check_branch
      %49 = sbr.rel (0) target = $region17
    $region16: #{tpu_custom_call.1} parent=1 // pred_region
      %s51 = ssub.s32 32, 32
      %52 = vsyncadd [#allocation9], %s51
      %s54 = sshll.u32 [#allocation8], 4
      %s55 = int_to_ptr.vmem [resolvable:$true] %s54
      %57 = dma.hbm_to_vmem [thread:$0]  %s3, 32, %s55, [#allocation9]
    $region17: #{tpu_custom_call.1} parent=1 // pred_fallthru
      _
    // Predicated region
    $region18: #{tpu_custom_call.1} parent=1 // pred_check
      _
    $region19: #{tpu_custom_call.1} parent=1 // pred_check_branch
      %59 = sbr.rel (0) target = $region21
    $region20: #{tpu_custom_call.1} parent=1 // pred_region
      %s61 = ssub.s32 16, 16
      %62 = vsyncadd [#allocation9], %s61
      %s64 = sshll.u32 [#allocation10], 4
      %s65 = int_to_ptr.vmem [resolvable:$true] %s64
      %67 = dma.hbm_to_vmem [thread:$0]  %s4, 16, %s65, [#allocation9]
    $region21: #{tpu_custom_call.1} parent=1 // pred_fallthru
      _
    // Predicated region
    $region22: #{tpu_custom_call.1} parent=1 // pred_check
      _
    $region23: #{tpu_custom_call.1} parent=1 // pred_check_branch
      %69 = sbr.rel (0) target = $region25
    $region24: #{tpu_custom_call.1} parent=1 // pred_region
      %70 = dma.done [#allocation3], 2048
    $region25: #{tpu_custom_call.1} parent=1 // pred_fallthru
      _
    // Predicated region
    $region26: #{tpu_custom_call.1} parent=1 // pred_check
      _
    $region27: #{tpu_custom_call.1} parent=1 // pred_check_branch
      %72 = sbr.rel (0) target = $region29
    $region28: #{tpu_custom_call.1} parent=1 // pred_region
      %73 = dma.done [#allocation6], 512
    $region29: #{tpu_custom_call.1} parent=1 // pred_fallthru
      _
    // Predicated region
    $region30: #{tpu_custom_call.1} parent=1 // pred_check
      _
    $region31: #{tpu_custom_call.1} parent=1 // pred_check_branch
      %75 = sbr.rel (0) target = $region33
    $region32: #{tpu_custom_call.1} parent=1 // pred_region
      %76 = dma.done [#allocation6], 16
    $region33: #{tpu_custom_call.1} parent=1 // pred_fallthru
      _
    // Predicated region
    $region34: #{tpu_custom_call.1} parent=1 // pred_check
      _
    $region35: #{tpu_custom_call.1} parent=1 // pred_check_branch
      %78 = sbr.rel (0) target = $region37
    $region36: #{tpu_custom_call.1} parent=1 // pred_region
      %79 = dma.done [#allocation9], 32
    $region37: #{tpu_custom_call.1} parent=1 // pred_fallthru
      _
    // Predicated region
    $region38: #{tpu_custom_call.1} parent=1 // pred_check
      _
    $region39: #{tpu_custom_call.1} parent=1 // pred_check_branch
      %81 = sbr.rel (0) target = $region41
    $region40: #{tpu_custom_call.1} parent=1 // pred_region
      %82 = dma.done [#allocation9], 16
    $region41: #{tpu_custom_call.1} parent=1 // pred_fallthru
      _
    %v83 = vld [vmem:[#allocation2] sm:$0xff]
    %v84 = vld [vmem:[#allocation2 + $0x8] sm:$0xff]
    %v85 = vld [vmem:[#allocation2 + $0x10] sm:$0xff]
    %v86 = vld [vmem:[#allocation2 + $0x18] sm:$0xff]
    %v87 = vld [vmem:[#allocation2 + $0x20] sm:$0xff]
    %v88 = vld [vmem:[#allocation2 + $0x28] sm:$0xff]
    %v89 = vld [vmem:[#allocation2 + $0x30] sm:$0xff]
    %v90 = vld [vmem:[#allocation2 + $0x38] sm:$0xff]
    %v91 = vld [vmem:[#allocation2 + $0x40] sm:$0xff]
    %v92 = vld [vmem:[#allocation2 + $0x48] sm:$0xff]
    %v93 = vld [vmem:[#allocation2 + $0x50] sm:$0xff]
    %v94 = vld [vmem:[#allocation2 + $0x58] sm:$0xff]
    %v95 = vld [vmem:[#allocation2 + $0x60] sm:$0xff]
    %v96 = vld [vmem:[#allocation2 + $0x68] sm:$0xff]
    %v97 = vld [vmem:[#allocation2 + $0x70] sm:$0xff]
    %v98 = vld [vmem:[#allocation2 + $0x78] sm:$0xff]
    %v99 = vadd.f32 %v83, %v84
    %100 = vadd.xlane.f32.xlu0 %v99
    %v101 = vpop.xlane.xlu0 %100
    %v102 = vadd.f32 %v85, %v86
    %103 = vadd.xlane.f32.xlu0 %v102
    %v104 = vpop.xlane.xlu0 %103
    %v105 = vadd.f32 %v87, %v88
    %106 = vadd.xlane.f32.xlu0 %v105
    %v107 = vpop.xlane.xlu0 %106
    %v108 = vadd.f32 %v89, %v90
    %109 = vadd.xlane.f32.xlu0 %v108
    %v110 = vpop.xlane.xlu0 %109
    %v111 = vadd.f32 %v91, %v92
    %112 = vadd.xlane.f32.xlu0 %v111
    %v113 = vpop.xlane.xlu0 %112
    %v114 = vadd.f32 %v93, %v94
    %115 = vadd.xlane.f32.xlu0 %v114
    %v116 = vpop.xlane.xlu0 %115
    %v117 = vadd.f32 %v95, %v96
    %118 = vadd.xlane.f32.xlu0 %v117
    %v119 = vpop.xlane.xlu0 %118
    %v120 = vadd.f32 %v97, %v98
    %121 = vadd.xlane.f32.xlu0 %v120
    %v122 = vpop.xlane.xlu0 %121
    %v123 = vmul.f32 %v101, 0.00390625
    %v124 = vmul.f32 %v104, 0.00390625
    %v125 = vmul.f32 %v107, 0.00390625
    %v126 = vmul.f32 %v110, 0.00390625
    %v127 = vmul.f32 %v113, 0.00390625
    %v128 = vmul.f32 %v116, 0.00390625
    %v129 = vmul.f32 %v119, 0.00390625
    %v130 = vmul.f32 %v122, 0.00390625
    %v131 = vld [vmem:[#allocation5] sm:$0xff]
    %v132 = vld [vmem:[#allocation5 + $0x8] sm:$0xff]
    %v133 = vld [vmem:[#allocation5 + $0x10] sm:$0xff]
    %v134 = vld [vmem:[#allocation5 + $0x18] sm:$0xff]
    %v135 = vld [vmem:[#allocation7] sm:$0x1]
    %v137 = vlaneseq
    %v138 = vshrl.u32 %v137, 7
    %v139 = vsub.s32 0, %v138
    %v140 = vrot.slane %v135, %v139
    %v150 = vlaneseq
    %v151 = vand.u32 %v150, 127
    %v152 = vlaneseq
    %v153 = vshrl.u32 %v152, 7
    %v154 = vsub.s32 %v151, %v153
    %v155 = vrot.slane %v123, %v154
    %v156 = vadd.s32 %v151, 4294967288
    %v157 = vlaneseq
    %v158 = vshrl.u32 %v157, 7
    %v159 = vsub.s32 %v156, %v158
    %v160 = vrot.slane %v124, %v159
    %vm161 = vcmask 130112
    %v162 = vsel %vm161, %v160, %v155
    %v163 = vadd.s32 %v151, 4294967280
    %v164 = vlaneseq
    %v165 = vshrl.u32 %v164, 7
    %v166 = vsub.s32 %v163, %v165
    %v167 = vrot.slane %v125, %v166
    %vm168 = vcmask 195712
    %v169 = vsel %vm168, %v167, %v162
    %v170 = vadd.s32 %v151, 4294967272
    %v171 = vlaneseq
    %v172 = vshrl.u32 %v171, 7
    %v173 = vsub.s32 %v170, %v172
    %v174 = vrot.slane %v126, %v173
    %vm175 = vcmask 261312
    %v176 = vsel %vm175, %v174, %v169
    %v177 = vlaneseq
    %v178 = vshrl.u32 %v177, 7
    %v179 = vsub.s32 %v151, %v178
    %v180 = vrot.slane %v127, %v179
    %v181 = vlaneseq
    %v182 = vshrl.u32 %v181, 7
    %v183 = vsub.s32 %v156, %v182
    %v184 = vrot.slane %v128, %v183
    %v185 = vsel %vm161, %v184, %v180
    %v186 = vlaneseq
    %v187 = vshrl.u32 %v186, 7
    %v188 = vsub.s32 %v163, %v187
    %v189 = vrot.slane %v129, %v188
    %v190 = vsel %vm168, %v189, %v185
    %v191 = vlaneseq
    %v192 = vshrl.u32 %v191, 7
    %v193 = vsub.s32 %v170, %v192
    %v194 = vrot.slane %v130, %v193
    %v195 = vsel %vm175, %v194, %v190
    %vm196 = vcmask 1041409
    %v197 = vsel %vm196, %v195, %v176
    %vm198 = vcmask 261120
    %v199 = vsel %vm198, %v197, 0
    %201 = vmatprep.subr.mxu0 0.0
    %202 = vmatpush1.msra.mxu0 %v131
    %203 = vmatprep.subr.mxu0 0.0
    %204 = vmatpush1.msra.mxu0 %v132
    %205 = vmatprep.subr.mxu0 0.0
    %206 = vmatpush1.msra.mxu0 %v133
    %207 = vmatprep.subr.mxu0 0.0
    %208 = vmatpush1.msra.mxu0 %v134
    %209 = vmatprep.subr.mxu0 0.0
    %210 = vmatpush1.msra.mxu0 0.0
    %211 = vmatprep.subr.mxu0 0.0
    %212 = vmatpush1.msra.mxu0 0.0
    %213 = vmatprep.subr.mxu0 0.0
    %214 = vmatpush1.msra.mxu0 0.0
    %215 = vmatprep.subr.mxu0 0.0
    %216 = vmatpush1.msra.mxu0 0.0
    %217 = vmatprep.subr.mxu0 0.0
    %218 = vmatpush1.msra.mxu0 0.0
    %219 = vmatprep.subr.mxu0 0.0
    %220 = vmatpush1.msra.mxu0 0.0
    %221 = vmatprep.subr.mxu0 0.0
    %222 = vmatpush1.msra.mxu0 0.0
    %223 = vmatprep.subr.mxu0 0.0
    %224 = vmatpush1.msra.mxu0 0.0
    %225 = vmatprep.subr.mxu0 0.0
    %226 = vmatpush1.msra.mxu0 0.0
    %227 = vmatprep.subr.mxu0 0.0
    %228 = vmatpush1.msra.mxu0 0.0
    %229 = vmatprep.subr.mxu0 0.0
    %230 = vmatpush1.msra.mxu0 0.0
    %231 = vmatprep.subr.mxu0 0.0
    %232 = vmatpush1.msra.mxu0 0.0
    %233 = vmatprep.subr.mxu0 0.0
    %234 = vmatpush1.msra.mxu0 0.0
    %235 = vmatprep.subr.mxu0 0.0
    %236 = vmatpush1.msra.mxu0 0.0
    %237 = vmatprep.subr.mxu0 0.0
    %238 = vmatpush1.msra.mxu0 0.0
    %239 = vmatprep.subr.mxu0 0.0
    %240 = vmatpush1.msra.mxu0 0.0
    %241 = vmatprep.subr.mxu0 0.0
    %242 = vmatpush1.msra.mxu0 0.0
    %243 = vmatprep.subr.mxu0 0.0
    %244 = vmatpush1.msra.mxu0 0.0
    %245 = vmatprep.subr.mxu0 0.0
    %246 = vmatpush1.msra.mxu0 0.0
    %247 = vmatprep.subr.mxu0 0.0
    %248 = vmatpush1.msra.mxu0 0.0
    %249 = vmatprep.subr.mxu0 0.0
    %250 = vmatpush1.msra.mxu0 0.0
    %251 = vmatprep.subr.mxu0 0.0
    %252 = vmatpush1.msra.mxu0 0.0
    %253 = vmatprep.subr.mxu0 0.0
    %254 = vmatpush1.msra.mxu0 0.0
    %255 = vmatprep.subr.mxu0 0.0
    %256 = vmatpush1.msra.mxu0 0.0
    %257 = vmatprep.subr.mxu0 0.0
    %258 = vmatpush1.msra.mxu0 0.0
    %259 = vmatprep.subr.mxu0 0.0
    %260 = vmatpush1.msra.mxu0 0.0
    %261 = vmatprep.subr.mxu0 0.0
    %262 = vmatpush1.msra.mxu0 0.0
    %263 = vmatprep.subr.mxu0 0.0
    %264 = vmatpush1.msra.mxu0 0.0
    %265 = vmatprep.mubr.f32.mxu0 0.0
    %266 = vmatmul.mubr.f32.gmra.mrb[0].mxu0 %v199
    %v267 = vpop.f32.mrb[0].mxu0
    %v268 = vadd.f32 %v140, %v267
    %v269 = vpop.f32.mrb[0].mxu0
    %270 = vdwg.mxu0
    %v271 = vmax.f32 %v268, 0.0
    %v272 = vld [vmem:[#allocation8] sm:$0x3]
    %v273 = vld [vmem:[#allocation10] sm:$0x1]
    %v275 = vlaneseq
    %v276 = vshrl.u32 %v275, 7
    %v277 = vsub.s32 0, %v276
    %v278 = vrot.slane %v273, %v277
    %vm280 = vcmask 15360
    %v282 = vsel %vm280, %v271, 0
    %vm284 = vcmask 1041408
    %v286 = vsel %vm284, %v272, 0
    %288 = vmatprep.subr.mxu0 0.0
    %289 = vmatpush1.msra.mxu0 %v286
    %290 = vmatprep.subr.mxu0 0.0
    %291 = vmatpush1.msra.mxu0 0.0
    %292 = vmatprep.subr.mxu0 0.0
    %293 = vmatpush1.msra.mxu0 0.0
    %294 = vmatprep.subr.mxu0 0.0
    %295 = vmatpush1.msra.mxu0 0.0
    %296 = vmatprep.subr.mxu0 0.0
    %297 = vmatpush1.msra.mxu0 0.0
    %298 = vmatprep.subr.mxu0 0.0
    %299 = vmatpush1.msra.mxu0 0.0
    %300 = vmatprep.subr.mxu0 0.0
    %301 = vmatpush1.msra.mxu0 0.0
    %302 = vmatprep.subr.mxu0 0.0
    %303 = vmatpush1.msra.mxu0 0.0
    %304 = vmatprep.subr.mxu0 0.0
    %305 = vmatpush1.msra.mxu0 0.0
    %306 = vmatprep.subr.mxu0 0.0
    %307 = vmatpush1.msra.mxu0 0.0
    %308 = vmatprep.subr.mxu0 0.0
    %309 = vmatpush1.msra.mxu0 0.0
    %310 = vmatprep.subr.mxu0 0.0
    %311 = vmatpush1.msra.mxu0 0.0
    %312 = vmatprep.subr.mxu0 0.0
    %313 = vmatpush1.msra.mxu0 0.0
    %314 = vmatprep.subr.mxu0 0.0
    %315 = vmatpush1.msra.mxu0 0.0
    %316 = vmatprep.subr.mxu0 0.0
    %317 = vmatpush1.msra.mxu0 0.0
    %318 = vmatprep.subr.mxu0 0.0
    %319 = vmatpush1.msra.mxu0 0.0
    %320 = vmatprep.subr.mxu0 0.0
    %321 = vmatpush1.msra.mxu0 0.0
    %322 = vmatprep.subr.mxu0 0.0
    %323 = vmatpush1.msra.mxu0 0.0
    %324 = vmatprep.subr.mxu0 0.0
    %325 = vmatpush1.msra.mxu0 0.0
    %326 = vmatprep.subr.mxu0 0.0
    %327 = vmatpush1.msra.mxu0 0.0
    %328 = vmatprep.subr.mxu0 0.0
    %329 = vmatpush1.msra.mxu0 0.0
    %330 = vmatprep.subr.mxu0 0.0
    %331 = vmatpush1.msra.mxu0 0.0
    %332 = vmatprep.subr.mxu0 0.0
    %333 = vmatpush1.msra.mxu0 0.0
    %334 = vmatprep.subr.mxu0 0.0
    %335 = vmatpush1.msra.mxu0 0.0
    %336 = vmatprep.subr.mxu0 0.0
    %337 = vmatpush1.msra.mxu0 0.0
    %338 = vmatprep.subr.mxu0 0.0
    %339 = vmatpush1.msra.mxu0 0.0
    %340 = vmatprep.subr.mxu0 0.0
    %341 = vmatpush1.msra.mxu0 0.0
    %342 = vmatprep.subr.mxu0 0.0
    %343 = vmatpush1.msra.mxu0 0.0
    %344 = vmatprep.subr.mxu0 0.0
    %345 = vmatpush1.msra.mxu0 0.0
    %346 = vmatprep.subr.mxu0 0.0
    %347 = vmatpush1.msra.mxu0 0.0
    %348 = vmatprep.subr.mxu0 0.0
    %349 = vmatpush1.msra.mxu0 0.0
    %350 = vmatprep.subr.mxu0 0.0
    %351 = vmatpush1.msra.mxu0 0.0
    %352 = vmatprep.mubr.f32.mxu0 0.0
    %353 = vmatmul.mubr.f32.gmra.mrb[0].mxu0 %v282
    %v354 = vpop.f32.mrb[0].mxu0
    %v355 = vadd.f32 %v278, %v354
    %v356 = vpop.f32.mrb[0].mxu0
    %357 = vdwg.mxu0
    %v358 = vxor.u32 %v355, 2147483648
    %v359 = vmul.f32 %v358, 1.442695
    %v360 = vpow.pop %v359
    %v361 = vadd.f32 %v360, 1.0
    %v362 = vrcp.pop %v361
    %v363 = vmul.f32 1.0, %v362
    %v364 = vlaneseq
    %v365 = vshrl.u32 %v364, 7
    %v366 = vsub.s32 0, %v365
    %v367 = vrot.slane %v363, %v366
    %369 = vbcast.lane.b32.xlu0 %v367, 256
    %v370 = vpop.permute.xlu0 %369
    %s372 = sor.u32 256, 8
    %373 = vbcast.lane.b32.xlu0 %v367, %s372
    %v374 = vpop.permute.xlu0 %373
    %s376 = sor.u32 256, 16
    %377 = vbcast.lane.b32.xlu0 %v367, %s376
    %v378 = vpop.permute.xlu0 %377
    %s380 = sor.u32 256, 24
    %381 = vbcast.lane.b32.xlu0 %v367, %s380
    %v382 = vpop.permute.xlu0 %381
    %v383 = vlaneseq
    %v384 = vshrl.u32 %v383, 7
    %v385 = vsub.s32 1, %v384
    %v386 = vrot.slane %v363, %v385
    %388 = vbcast.lane.b32.xlu0 %v386, 256
    %v389 = vpop.permute.xlu0 %388
    %s391 = sor.u32 256, 8
    %392 = vbcast.lane.b32.xlu0 %v386, %s391
    %v393 = vpop.permute.xlu0 %392
    %s395 = sor.u32 256, 16
    %396 = vbcast.lane.b32.xlu0 %v386, %s395
    %v397 = vpop.permute.xlu0 %396
    %s399 = sor.u32 256, 24
    %400 = vbcast.lane.b32.xlu0 %v386, %s399
    %v401 = vpop.permute.xlu0 %400
    %v402 = vmul.f32 %v83, %v370
    %v403 = vmul.f32 %v84, %v370
    %v404 = vmul.f32 %v85, %v374
    %v405 = vmul.f32 %v86, %v374
    %v406 = vmul.f32 %v87, %v378
    %v407 = vmul.f32 %v88, %v378
    %v408 = vmul.f32 %v89, %v382
    %v409 = vmul.f32 %v90, %v382
    %v410 = vmul.f32 %v91, %v389
    %v411 = vmul.f32 %v92, %v389
    %v412 = vmul.f32 %v93, %v393
    %v413 = vmul.f32 %v94, %v393
    %v414 = vmul.f32 %v95, %v397
    %v415 = vmul.f32 %v96, %v397
    %v416 = vmul.f32 %v97, %v401
    %v417 = vmul.f32 %v98, %v401
    %418 = vst [vmem:[#allocation11] sm:$0xff] %v402
    %419 = vst [vmem:[#allocation11 + $0x8] sm:$0xff] %v403
    %420 = vst [vmem:[#allocation11 + $0x10] sm:$0xff] %v404
    %421 = vst [vmem:[#allocation11 + $0x18] sm:$0xff] %v405
    %422 = vst [vmem:[#allocation11 + $0x20] sm:$0xff] %v406
    %423 = vst [vmem:[#allocation11 + $0x28] sm:$0xff] %v407
    %424 = vst [vmem:[#allocation11 + $0x30] sm:$0xff] %v408
    %425 = vst [vmem:[#allocation11 + $0x38] sm:$0xff] %v409
    %426 = vst [vmem:[#allocation11 + $0x40] sm:$0xff] %v410
    %427 = vst [vmem:[#allocation11 + $0x48] sm:$0xff] %v411
    %428 = vst [vmem:[#allocation11 + $0x50] sm:$0xff] %v412
    %429 = vst [vmem:[#allocation11 + $0x58] sm:$0xff] %v413
    %430 = vst [vmem:[#allocation11 + $0x60] sm:$0xff] %v414
    %431 = vst [vmem:[#allocation11 + $0x68] sm:$0xff] %v415
    %432 = vst [vmem:[#allocation11 + $0x70] sm:$0xff] %v416
    %433 = vst [vmem:[#allocation11 + $0x78] sm:$0xff] %v417
    // Predicated region
    $region42: #{tpu_custom_call.1} parent=1 // pred_check
      _
    $region43: #{tpu_custom_call.1} parent=1 // pred_check_branch
      %435 = sbr.rel (0) target = $region45
    $region44: #{tpu_custom_call.1} parent=1 // pred_region
      %s437 = ssub.s32 2048, 2048
      %438 = vsyncadd [#allocation4], %s437
      %s439 = sshll.u32 [#allocation11], 4
      %s440 = int_to_ptr.vmem [resolvable:$true] %s439
      %445 = dma.vmem_to_hbm [thread:$0]  %s440, 2048, %s5, [#allocation4], 256, 256, 16
    $region45: #{tpu_custom_call.1} parent=1 // pred_fallthru
      _
    // Predicated region
    $region46: #{tpu_custom_call.1} parent=1 // pred_check
      _
    $region47: #{tpu_custom_call.1} parent=1 // pred_check_branch
      %447 = sbr.rel (0) target = $region49
    $region48: #{tpu_custom_call.1} parent=1 // pred_region
      %448 = dma.done [#allocation4], 2048
    $region49: #{tpu_custom_call.1} parent=1 // pred_fallthru
      _
    %449 = vsyncpa [#allocation3], 1
    %450 = vsyncpa [#allocation6], 1
    %451 = vsyncpa [#allocation9], 1
    %452 = vsyncpa [#allocation4], 1

</llo_original>
